<compile_context>
chip_gen: v7x
topology: tpu7x:2x2x1
jax: 0.10.0
libtpu: 0.0.40
codegen_flags: <defaults>
</compile_context>

<pallas_src>
import functools

import jax
import jax.numpy as jnp
from jax.experimental import pallas as pl
from jax.experimental.pallas import tpu as pltpu


def _round_up(x, m):
    return ((x + m - 1) // m) * m


# ---------------------------------------------------------------------------
# Kernel 1: neighbor-weight projection   v_proj = vertex @ (nh_w / nh_size)
# ---------------------------------------------------------------------------
def _project_kernel(v_ref, w_ref, o_ref):
    o_ref[...] = jnp.dot(v_ref[...], w_ref[...],
                         preferred_element_type=jnp.float32).astype(o_ref.dtype)


# ---------------------------------------------------------------------------
# Kernel 2: neighbor aggregation (one-hot counts @ v_proj) + center matmul
#   grid = (row tiles i, compacted source-tile slots k)
# ---------------------------------------------------------------------------
def _node_avg_kernel(tiles_ref, ntiles_ref,                 # scalar prefetch (SMEM)
                     idx_ref, vrow_ref, vproj_ref, cw_ref, b_ref,   # inputs
                     o_ref,                                 # output
                     acc_ref,                               # VMEM scratch
                     *, nh_size, tkc, tiles_stride):
    i = pl.program_id(0)
    k = pl.program_id(1)
    nk = pl.num_programs(1)
    tm, _ = acc_ref.shape
    tk = vproj_ref.shape[0]

    @pl.when(k == 0)
    def _init():
        acc_ref[...] = jnp.zeros_like(acc_ref)

    # Only real (non-duplicate) source tiles contribute.  Padded slots repeat
    # the previous block index (their DMA is elided) and are skipped here.
    @pl.when(k < ntiles_ref[i])
    def _accumulate():
        base = tiles_ref[i * tiles_stride + k] * tk     # first node id of tile
        idx_local = idx_ref[...] - base                 # [TM, NH] int32
        lane = jax.lax.broadcasted_iota(jnp.int32, (tm, tkc), 1)  # k-invariant
        for c in range(tk // tkc):                      # static, small chunk count
            idx_c = idx_local - c * tkc
            # One-hot neighbor counts for this chunk (counts <= NH: exact).
            cnt = (lane == idx_c[:, 0:1]).astype(jnp.float32)
            for j in range(1, nh_size):
                cnt = cnt + (lane == idx_c[:, j:j + 1]).astype(jnp.float32)
            acc_ref[...] += jnp.dot(
                cnt.astype(jnp.bfloat16),
                vproj_ref[c * tkc:(c + 1) * tkc, :],
                preferred_element_type=jnp.float32)

    @pl.when(k == nk - 1)
    def _finalize():
        zc = jnp.dot(vrow_ref[...], cw_ref[...],
                     preferred_element_type=jnp.float32)   # f32 center path
        z = acc_ref[...] + zc + b_ref[...]
        o_ref[...] = jnp.maximum(z, 0.0)
        # TODO(synk): nn.Dropout omitted (identity in eval mode).


# ---------------------------------------------------------------------------
# Wrapper
# ---------------------------------------------------------------------------
def node_average_layer(vertex, nh_indices, center_w, nh_w, bias, *,
                       tm=512, tk=1024, tkc=512):
    vertex = vertex.astype(jnp.float32)
    n, in_dim = vertex.shape
    out_dim = center_w.shape[1]
    nh = nh_indices.shape[1]

    # ---- tile sizing (rows and sources padded independently; no lcm) -------
    tm = _round_up(min(tm, n), 8)          # f32/int32 row blocks: sublane mult of 8
    tk = _round_up(min(tk, n), 16)         # bf16 source blocks: sublane mult of 16
    tkc = _round_up(max(16, min(tkc, tk)), 16)
    if tkc > tk:
        tkc = tk
    if tk % tkc:
        tk = _round_up(tk, tkc)
    n_pad_m = _round_up(n, tm)
    n_pad_k = _round_up(n, tk)
    n_rt = n_pad_m // tm
    n_kt = n_pad_k // tk
    # A row tile references at most TM*NH distinct source tiles.
    k_steps = min(n_kt, tm * nh)

    idx = nh_indices.astype(jnp.int32)
    v_rows = vertex
    if n_pad_m != n:
        idx = jnp.pad(idx, ((0, n_pad_m - n), (0, 0)))
        v_rows = jnp.pad(v_rows, ((0, n_pad_m - n), (0, 0)))
    v_src = vertex if n_pad_k == n else jnp.pad(vertex, ((0, n_pad_k - n), (0, 0)))

    # ---- kernel 1: project neighbor path into output space (bf16) ----------
    nh_w_scaled = nh_w.astype(jnp.float32) / jnp.float32(nh)
    v_proj = pl.pallas_call(
        _project_kernel,
        out_shape=jax.ShapeDtypeStruct((n_pad_k, out_dim), jnp.bfloat16),
        grid_spec=pltpu.PrefetchScalarGridSpec(
            num_scalar_prefetch=0,
            grid=(n_kt,),
            in_specs=[pl.BlockSpec((tk, in_dim), lambda i: (i, 0)),
                      pl.BlockSpec((in_dim, out_dim), lambda i: (0, 0))],
            out_specs=pl.BlockSpec((tk, out_dim), lambda i: (i, 0))),
        compiler_params=pltpu.CompilerParams(
            dimension_semantics=("parallel",)),
    )(v_src, nh_w_scaled)

    # ---- compacted per-row-tile source-tile lists (scalar prefetch) --------
    use_sparse = k_steps < n_kt
    if use_sparse:
        tile_of = idx // tk                               # [n_pad_m, NH]
        per_rt = tile_of.reshape(n_rt, tm * nh)
        srt = jnp.sort(per_rt, axis=1)
        is_new = jnp.concatenate(
            [jnp.ones((n_rt, 1), dtype=bool), srt[:, 1:] != srt[:, :-1]], axis=1)
        ntiles = jnp.sum(is_new, axis=1).astype(jnp.int32)        # in [1, k_steps]
        uniq = jnp.sort(jnp.where(is_new, srt, jnp.int32(n_kt)),
                        axis=1)[:, :k_steps]
        last = jnp.take_along_axis(
            uniq, jnp.clip(ntiles - 1, 0, k_steps - 1)[:, None], axis=1)
        tiles = jnp.where(uniq < n_kt, uniq, last).astype(jnp.int32).reshape(-1)
        stride = k_steps
    else:
        # Dense scan: every source tile is visited once; tiny SMEM tables.
        tiles = jnp.arange(k_steps, dtype=jnp.int32)
        ntiles = jnp.full((n_rt,), k_steps, dtype=jnp.int32)
        stride = 0

    # ---- VMEM budget: double-buffered operands + accumulator + mask temps --
    est = (2 * (tm * nh * 4 + tm * in_dim * 4 + tk * out_dim * 2
                + in_dim * out_dim * 4 + out_dim * 4 + tm * out_dim * 4)
           + tm * out_dim * 4 + 4 * tm * tkc * 4)
    vmem_limit = int(min(64 * 2 ** 20, max(32 * 2 ** 20, 2 * est)))  # v7x-safe cap

    kernel = functools.partial(_node_avg_kernel, nh_size=nh, tkc=tkc,
                               tiles_stride=stride)
    cw = center_w.astype(jnp.float32)
    bias2d = bias.reshape(1, out_dim).astype(jnp.float32)

    out = pl.pallas_call(
        kernel,
        out_shape=jax.ShapeDtypeStruct((n_pad_m, out_dim), jnp.float32),
        grid_spec=pltpu.PrefetchScalarGridSpec(
            num_scalar_prefetch=2,                       # tiles, ntiles -> SMEM
            grid=(n_rt, k_steps),
            in_specs=[
                # NOTE: idx / v_rows / cw / bias are k-invariant (re-DMA elided);
                # at production dims pipeline_mode=pl.Buffered(1) would also drop
                # their second VMEM buffer.
                pl.BlockSpec((tm, nh), lambda i, k, tl, nt: (i, 0)),
                pl.BlockSpec((tm, in_dim), lambda i, k, tl, nt: (i, 0)),
                pl.BlockSpec((tk, out_dim),
                             lambda i, k, tl, nt: (tl[i * stride + k], 0)),
                pl.BlockSpec((in_dim, out_dim), lambda i, k, tl, nt: (0, 0)),
                pl.BlockSpec((1, out_dim), lambda i, k, tl, nt: (0, 0)),
            ],
            out_specs=pl.BlockSpec((tm, out_dim), lambda i, k, tl, nt: (i, 0)),
            scratch_shapes=[pltpu.VMEM((tm, out_dim), jnp.float32)],
        ),
        compiler_params=pltpu.CompilerParams(
            dimension_semantics=("parallel", "arbitrary"),
            vmem_limit_bytes=vmem_limit),
    )(tiles, ntiles, idx, v_rows, v_proj, cw, bias2d)

    return out[:n]


# ---------------------------------------------------------------------------
# Pure-JAX reference (mirrors the PyTorch forward, eval mode)
# ---------------------------------------------------------------------------
def reference(vertex, nh_indices, center_w, nh_w, bias):
    nh = nh_indices.shape[1]
    zc = vertex @ center_w
    zn = vertex @ nh_w
    zn_mean = zn[nh_indices].sum(axis=1) / nh
    return jnp.maximum(zc + zn_mean + bias, 0.0)


if __name__ == "__main__":
    def run_case(name, n, nh, in_dim, out_dim, tm, tk, tkc, key):
        k_v, k_i, k_c, k_n, k_b = jax.random.split(key, 5)
        vertex = jax.random.normal(k_v, (n, in_dim), jnp.float32)
        nh_indices = jax.random.randint(k_i, (n, nh), 0, n, jnp.int32)
        std = 1.0 / in_dim                      # reset_parameters(): U(-1/in, 1/in)
        center_w = jax.random.uniform(k_c, (in_dim, out_dim), jnp.float32, -std, std)
        nh_w = jax.random.uniform(k_n, (in_dim, out_dim), jnp.float32, -std, std)
        # Module init fills bias with 0; use a small random bias to exercise the add.
        bias = jax.random.uniform(k_b, (out_dim,), jnp.float32, -0.1, 0.1)

        out = node_average_layer(vertex, nh_indices, center_w, nh_w, bias,
                                 tm=tm, tk=tk, tkc=tkc)
        out = jax.block_until_ready(out)
        ref = reference(vertex, nh_indices, center_w, nh_w, bias)
        err = float(jnp.max(jnp.abs(out - ref)))
        assert out.shape == (n, out_dim), (name, out.shape)
        # bf16 neighbor path (f32 accumulate, f32 center path) vs f32 reference.
        assert jnp.allclose(out, ref, atol=2e-2, rtol=2e-2), (name, err)

    key = jax.random.PRNGKey(0)
    k1, k2 = jax.random.split(key)

    # Dense-ish config: exercises multiple row tiles, the k-reduction with the
    # VMEM accumulator, and the inner TK chunking (2 chunks per step).
    run_case("dense", n=512, nh=8, in_dim=32, out_dim=128,
             tm=128, tk=256, tkc=128, key=k1)

    # Sparse config (N >> TM*NH): exercises the scalar-prefetch compacted
    # source-tile list and the pl.when skip of empty/duplicate tile slots.
    run_case("sparse", n=2048, nh=2, in_dim=32, out_dim=128,
             tm=8, tk=64, tkc=64, key=k2)

    print("KERNEL_OK")
</pallas_src>

<mosaic_0001>
module attributes {stable_mosaic.version = 11 : i64} {
  func.func @_project_kernel(%arg0: i32, %arg1: memref<256x32xf32, #tpu.memory_space<vmem>>, %arg2: memref<32x128xf32, #tpu.memory_space<vmem>>, %arg3: memref<256x128xbf16, #tpu.memory_space<vmem>>) attributes {dimension_semantics = [#tpu.dimension_semantics<parallel>], iteration_bounds = array<i64: 2>, scalar_prefetch = 0 : i64, scratch_operands = 0 : i64, tpu.core_type = #tpu.core_type<tc>, window_params = [{transform_indices = @transform_0, window_bounds = array<i64: 256, 32>}, {pipeline_mode = #tpu.pipeline_mode<synchronous>, transform_indices = @transform_1, window_bounds = array<i64: 32, 128>}, {transform_indices = @transform_2, window_bounds = array<i64: 256, 128>}]} {
    %c0 = arith.constant 0 : index
    %c0_0 = arith.constant 0 : index
    %0 = vector.load %arg1[%c0, %c0_0] : memref<256x32xf32, #tpu.memory_space<vmem>>, vector<256x32xf32>
    %c0_1 = arith.constant 0 : index
    %c0_2 = arith.constant 0 : index
    %1 = vector.load %arg2[%c0_1, %c0_2] : memref<32x128xf32, #tpu.memory_space<vmem>>, vector<32x128xf32>
    %cst = arith.constant dense<0.000000e+00> : vector<256x128xf32>
    %2 = tpu.matmul %0, %1, %cst {dimension_numbers = #tpu.dot_dimension_numbers<[1], [0], [0], [1], [0, 0, 1, 1], [], []>} : vector<256x32xf32>, vector<32x128xf32>, vector<256x128xf32> -> vector<256x128xf32>
    %3 = arith.truncf %2 : vector<256x128xf32> to vector<256x128xbf16>
    %c0_3 = arith.constant 0 : index
    %c0_4 = arith.constant 0 : index
    %4 = vector.load %arg3[%c0_3, %c0_4] : memref<256x128xbf16, #tpu.memory_space<vmem>>, vector<256x128xbf16>
    tpu.vector_store %arg3[%c0_3, %c0_4], %3 {strides = array<i32>} : memref<256x128xbf16, #tpu.memory_space<vmem>>, vector<256x128xbf16>,
    return
  }
  func.func @transform_0(%arg0: i32) -> (i32, i32) {
    %c0_i32 = arith.constant 0 : i32
    %c0_i32_0 = arith.constant 0 : i32
    return %arg0, %c0_i32 : i32, i32
  }
  func.func @transform_1(%arg0: i32) -> (i32, i32) {
    %c0_i32 = arith.constant 0 : i32
    %c0_i32_0 = arith.constant 0 : i32
    %c0_i32_1 = arith.constant 0 : i32
    return %c0_i32, %c0_i32_0 : i32, i32
  }
  func.func @transform_2(%arg0: i32) -> (i32, i32) {
    %c0_i32 = arith.constant 0 : i32
    %c0_i32_0 = arith.constant 0 : i32
    return %arg0, %c0_i32 : i32, i32
  }
}

</mosaic_0001>

<llo_original>
// kernel: tpu_custom_call.1
$region0: #{tpu_custom_call.1}
  #allocation0 [shape = 'u32[]', space=smem, size = 0x4, offset = 0x4, fixed_abs, tag = 'smem constant byte address 0x4 - core index']
  #allocation1 [shape = 'u32[144,128]{1,0:T(1,128)}', space=vmem, size = 0x12000, scoped, tag = 'internal scratch']
  %s0 = inlined_call_operand.vmem [shape: f32[512,32], index: 0, kind: input, shape index: {}]
  %s1 = inlined_call_operand.vmem [shape: f32[32,128], index: 1, kind: input, shape index: {}]
  %s2 = inlined_call_operand.hbm [shape: bf16[512,128], index: 2, kind: output, shape index: {}]
  %s3 = sld [smem:[#allocation0]]
  $region41: #{tpu_custom_call.1} parent=0
    _
  %s5 = ssub.s32 1, %s3
  %s6 = scalar_select 0, %s5, %s3
  $region1: #{tpu_custom_call.1} parent=0
    #allocation2 [shape = 'u8[131072]{0}', space=vmem, size = 0x20000, scoped, tag = 'output window, operand 0']
    #allocation3 [shape = 's32[2]{0}', space=sflag, size = 0x8, scoped, tag = 'scoped memory for tpu_custom_call.1']
    %7 = vsyncpa [#allocation3], 0
    %s8 = scalar_lea.sflag [#allocation3], 1
    %9 = vsyncpa %s8, 0
    loop: start=0, step=1, limit=4
    $region2: #{tpu_custom_call.1} parent=1 // loop_pre_header
      _
    $region3: #{tpu_custom_call.1} parent=1 // loop_header
      %s11 = sphi 0, %s15
      %p12 = scmp.ge.s32.totalorder %s11, 4
      %s21 = sphi 0, %s23
      %s24 = sphi 0, %s21
      %s25 = sphi 0, %s24
      %s41 = sphi 0, %s25
      %s45 = sphi 0, %s45
      %s47 = sphi 0, %s45
      %s48 = sphi 0, %s47
      %s62 = sphi 0, %s48
      %s68 = sphi 0, %s70
      %s71 = sphi 0, %s68
      %s72 = sphi 0, %s71
      %s88 = sphi 0, %s72
    $region4: #{tpu_custom_call.1} parent=1 // loop_header_branch
      %14 = sbr.rel (%p12) target = $region8
    $region5: #{tpu_custom_call.1} parent=1 // loop_body
      %s16 = ssub.s32 %s11, 1
      %s17 = ssub.s32 %s11, 2
      %s18 = sadd.s32 %s11, 1
      %s19 = ssub.s32 %s11, %s18
      %p20 = scmp.eq.s32.totalorder %s19, 0
      %s22 = sadd.s32 %s21, 1
      %s23 = scalar_select %p20, %s21, %s22
      %p26 = pneg %p20
      %p27 = scmp.eq.s32.totalorder %s11, 1
      %p28 = por %p26, %p27
      %p29 = scmp.ne.s32.totalorder %s21, %s24
      %p30 = scmp.eq.s32.totalorder %s11, 0
      %p31 = por %p29, %p30
      %p32 = scmp.ne.s32.totalorder %s21, %s24
      %p33 = scmp.eq.s32.totalorder %s16, 1
      %p34 = por %p32, %p33
      %p35 = scmp.ne.s32.totalorder %s24, %s25
      %p36 = scmp.eq.s32.totalorder %s16, 0
      %p37 = por %p35, %p36
      %p38 = scmp.ne.s32.totalorder %s24, %s25
      %p39 = scmp.eq.s32.totalorder %s17, 1
      %p40 = por %p38, %p39
      %p42 = scmp.ne.s32.totalorder %s25, %s41
      %p43 = scmp.eq.s32.totalorder %s17, 0
      %p44 = por %p42, %p43
      %s46 = sadd.s32 %s45, 1
      %p49 = scmp.eq.s32.totalorder %s11, 1
      %p50 = scmp.ne.s32.totalorder %s45, %s47
      %p51 = scmp.eq.s32.totalorder %s11, 0
      %p52 = por %p50, %p51
      %p53 = scmp.ne.s32.totalorder %s45, %s47
      %p54 = scmp.eq.s32.totalorder %s16, 1
      %p55 = por %p53, %p54
      %p56 = scmp.ne.s32.totalorder %s47, %s48
      %p57 = scmp.eq.s32.totalorder %s16, 0
      %p58 = por %p56, %p57
      %p59 = scmp.ne.s32.totalorder %s47, %s48
      %p60 = scmp.eq.s32.totalorder %s17, 1
      %p61 = por %p59, %p60
      %p63 = scmp.ne.s32.totalorder %s48, %s62
      %p64 = scmp.eq.s32.totalorder %s17, 0
      %p65 = por %p63, %p64
      %s66 = ssub.s32 %s11, %s18
      %p67 = scmp.eq.s32.totalorder %s66, 0
      %s69 = sadd.s32 %s68, 1
      %s70 = scalar_select %p67, %s68, %s69
      %p73 = pneg %p67
      %p74 = scmp.eq.s32.totalorder %s11, 1
      %p75 = por %p73, %p74
      %p76 = scmp.ne.s32.totalorder %s68, %s71
      %p77 = scmp.eq.s32.totalorder %s11, 0
      %p78 = por %p76, %p77
      %p79 = scmp.ne.s32.totalorder %s68, %s71
      %p80 = scmp.eq.s32.totalorder %s16, 1
      %p81 = por %p79, %p80
      %p82 = scmp.ne.s32.totalorder %s71, %s72
      %p83 = scmp.eq.s32.totalorder %s16, 0
      %p84 = por %p82, %p83
      %p85 = scmp.ne.s32.totalorder %s71, %s72
      %p86 = scmp.eq.s32.totalorder %s17, 1
      %p87 = por %p85, %p86
      %p89 = scmp.ne.s32.totalorder %s72, %s88
      %p90 = scmp.eq.s32.totalorder %s17, 0
      %p91 = por %p89, %p90
      %p92 = scmp.le.s32.totalorder 1, %s11
      %p93 = scmp.lt.s32.totalorder %s11, 3
      %p94 = pnand %p92, %p93
      %p95 = pneg %p94
      // Predicated region
      $region9: #{tpu_custom_call.1} parent=5 // pred_check
        _
      $region10: #{tpu_custom_call.1} parent=5 // pred_check_branch
        %97 = sbr.rel (%p94) target = $region12
      $region11: #{tpu_custom_call.1} parent=5 // pred_region
        %s98 = ssub.s32 %s11, 1
        // Predicated region
        $region13: #{tpu_custom_call.1} parent=11 // pred_check
          %p99 = pneg %p58
        $region14: #{tpu_custom_call.1} parent=11 // pred_check_branch
          %101 = sbr.rel (%p99) target = $region16
        $region15: #{tpu_custom_call.1} parent=11 // pred_region
          _
        $region16: #{tpu_custom_call.1} parent=11 // pred_fallthru
          _
      $region12: #{tpu_custom_call.1} parent=5 // pred_fallthru
        _
      %p102 = scmp.lt.s32.totalorder %s11, 2
      // Predicated region
      $region17: #{tpu_custom_call.1} parent=5 // pred_check
        %p103 = pneg %p102
      $region18: #{tpu_custom_call.1} parent=5 // pred_check_branch
        %105 = sbr.rel (%p103) target = $region20
      $region19: #{tpu_custom_call.1} parent=5 // pred_region
        // Predicated region
        $region21: #{tpu_custom_call.1} parent=19 // pred_check
          %p106 = pneg %p31
        $region22: #{tpu_custom_call.1} parent=19 // pred_check_branch
          %108 = sbr.rel (%p106) target = $region24
        $region23: #{tpu_custom_call.1} parent=19 // pred_region
          %s109 = smul.u32 32, %s11
          %p110 = scmp.lt.s32.totalorder %s109, 63
          %s111 = scalar_select %p110, %s109, 63
          %s112 = smul.addr %s111, 8
          %s113 = scalar_lea.vmem %s0, %s112
          %s114 = smul.u32 32, %s11
        $region24: #{tpu_custom_call.1} parent=19 // pred_fallthru
          _
      $region20: #{tpu_custom_call.1} parent=5 // pred_fallthru
        _
      %p115 = scmp.le.s32.totalorder 1, %s11
      %p116 = scmp.lt.s32.totalorder %s11, 3
      %p117 = pnand %p115, %p116
      %p118 = pneg %p117
      // Predicated region
      $region25: #{tpu_custom_call.1} parent=5 // pred_check
        _
      $region26: #{tpu_custom_call.1} parent=5 // pred_check_branch
        %120 = sbr.rel (%p117) target = $region28
      $region27: #{tpu_custom_call.1} parent=5 // pred_region
        %s121 = ssub.s32 %s11, 1
        %s122 = smul.u32 32, %s16
        %p123 = scmp.lt.s32.totalorder %s122, 63
        %s124 = scalar_select %p123, %s122, 63
        %s125 = smul.addr %s124, 8
        %s126 = scalar_lea.vmem %s0, %s125
        %p127 = pneg %p37
        %p128 = pneg %p34
        %p129 = pneg %p58
        %p130 = pneg %p55
        %p131 = pneg %p84
        %p132 = pneg %p81
        %s133 = sand.u32 %s71, 1
        %s134 = scalar_lea.sflag [#allocation3], %s133
        %s135 = sand.u32 %s71, 1
        %s136 = smul.addr %s135, 128
        %s137 = scalar_lea.vmem [#allocation2], %s136
        %s138 = smul.u32 32, %s16
        %p139 = scmp.lt.s32.totalorder %s138, 63
        %s140 = scalar_select %p139, %s138, 63
        %s141 = smul.addr %s140, 8
        %s142 = scalar_lea.vmem %s0, %s141
        %s143 = smul.u32 32, %s16
        %s144 = smul.u32 32, %s16
        %v145 = vld [vmem:[%s142] sm:$0xff]
        %v146 = vld [vmem:[%s142 + $0x8] sm:$0xff]
        %v147 = vld [vmem:[%s142 + $0x10] sm:$0xff]
        %v148 = vld [vmem:[%s142 + $0x18] sm:$0xff]
        %v149 = vld [vmem:[%s142 + $0x20] sm:$0xff]
        %v150 = vld [vmem:[%s142 + $0x28] sm:$0xff]
        %v151 = vld [vmem:[%s142 + $0x30] sm:$0xff]
        %v152 = vld [vmem:[%s142 + $0x38] sm:$0xff]
        %v153 = vld [vmem:[%s142 + $0x40] sm:$0xff]
        %v154 = vld [vmem:[%s142 + $0x48] sm:$0xff]
        %v155 = vld [vmem:[%s142 + $0x50] sm:$0xff]
        %v156 = vld [vmem:[%s142 + $0x58] sm:$0xff]
        %v157 = vld [vmem:[%s142 + $0x60] sm:$0xff]
        %v158 = vld [vmem:[%s142 + $0x68] sm:$0xff]
        %v159 = vld [vmem:[%s142 + $0x70] sm:$0xff]
        %v160 = vld [vmem:[%s142 + $0x78] sm:$0xff]
        %v161 = vld [vmem:[%s142 + $0x80] sm:$0xff]
        %v162 = vld [vmem:[%s142 + $0x88] sm:$0xff]
        %v163 = vld [vmem:[%s142 + $0x90] sm:$0xff]
        %v164 = vld [vmem:[%s142 + $0x98] sm:$0xff]
        %v165 = vld [vmem:[%s142 + $0xa0] sm:$0xff]
        %v166 = vld [vmem:[%s142 + $0xa8] sm:$0xff]
        %v167 = vld [vmem:[%s142 + $0xb0] sm:$0xff]
        %v168 = vld [vmem:[%s142 + $0xb8] sm:$0xff]
        %v169 = vld [vmem:[%s142 + $0xc0] sm:$0xff]
        %v170 = vld [vmem:[%s142 + $0xc8] sm:$0xff]
        %v171 = vld [vmem:[%s142 + $0xd0] sm:$0xff]
        %v172 = vld [vmem:[%s142 + $0xd8] sm:$0xff]
        %v173 = vld [vmem:[%s142 + $0xe0] sm:$0xff]
        %v174 = vld [vmem:[%s142 + $0xe8] sm:$0xff]
        %v175 = vld [vmem:[%s142 + $0xf0] sm:$0xff]
        %v176 = vld [vmem:[%s142 + $0xf8] sm:$0xff]
        %v177 = vld [vmem:[%s1] sm:$0xff]
        %v178 = vld [vmem:[%s1 + $0x8] sm:$0xff]
        %v179 = vld [vmem:[%s1 + $0x10] sm:$0xff]
        %v180 = vld [vmem:[%s1 + $0x18] sm:$0xff]
        %vm181 = vcmask 261120
        %v183 = vsel %vm181, %v145, 0
        %v186 = vsel %vm181, %v146, 0
        %v189 = vsel %vm181, %v147, 0
        %v192 = vsel %vm181, %v148, 0
        %v195 = vsel %vm181, %v149, 0
        %v198 = vsel %vm181, %v150, 0
        %v201 = vsel %vm181, %v151, 0
        %v204 = vsel %vm181, %v152, 0
        %v207 = vsel %vm181, %v153, 0
        %v210 = vsel %vm181, %v154, 0
        %v213 = vsel %vm181, %v155, 0
        %v216 = vsel %vm181, %v156, 0
        %v219 = vsel %vm181, %v157, 0
        %v222 = vsel %vm181, %v158, 0
        %v225 = vsel %vm181, %v159, 0
        %v228 = vsel %vm181, %v160, 0
        %v231 = vsel %vm181, %v161, 0
        %v234 = vsel %vm181, %v162, 0
        %v237 = vsel %vm181, %v163, 0
        %v240 = vsel %vm181, %v164, 0
        %v243 = vsel %vm181, %v165, 0
        %v246 = vsel %vm181, %v166, 0
        %v249 = vsel %vm181, %v167, 0
        %v252 = vsel %vm181, %v168, 0
        %v255 = vsel %vm181, %v169, 0
        %v258 = vsel %vm181, %v170, 0
        %v261 = vsel %vm181, %v171, 0
        %v264 = vsel %vm181, %v172, 0
        %v267 = vsel %vm181, %v173, 0
        %v270 = vsel %vm181, %v174, 0
        %v273 = vsel %vm181, %v175, 0
        %v276 = vsel %vm181, %v176, 0
        %278 = vmatprep.subr.mxu0 0.0
        %279 = vmatpush1.msra.mxu0 %v177
        %280 = vmatprep.subr.mxu0 0.0
        %281 = vmatpush1.msra.mxu0 %v178
        %282 = vmatprep.subr.mxu0 0.0
        %283 = vmatpush1.msra.mxu0 %v179
        %284 = vmatprep.subr.mxu0 0.0
        %285 = vmatpush1.msra.mxu0 %v180
        %286 = vmatprep.subr.mxu0 0.0
        %287 = vmatpush1.msra.mxu0 0.0
        %288 = vmatprep.subr.mxu0 0.0
        %289 = vmatpush1.msra.mxu0 0.0
        %290 = vmatprep.subr.mxu0 0.0
        %291 = vmatpush1.msra.mxu0 0.0
        %292 = vmatprep.subr.mxu0 0.0
        %293 = vmatpush1.msra.mxu0 0.0
        %294 = vmatprep.subr.mxu0 0.0
        %295 = vmatpush1.msra.mxu0 0.0
        %296 = vmatprep.subr.mxu0 0.0
        %297 = vmatpush1.msra.mxu0 0.0
        %298 = vmatprep.subr.mxu0 0.0
        %299 = vmatpush1.msra.mxu0 0.0
        %300 = vmatprep.subr.mxu0 0.0
        %301 = vmatpush1.msra.mxu0 0.0
        %302 = vmatprep.subr.mxu0 0.0
        %303 = vmatpush1.msra.mxu0 0.0
        %304 = vmatprep.subr.mxu0 0.0
        %305 = vmatpush1.msra.mxu0 0.0
        %306 = vmatprep.subr.mxu0 0.0
        %307 = vmatpush1.msra.mxu0 0.0
        %308 = vmatprep.subr.mxu0 0.0
        %309 = vmatpush1.msra.mxu0 0.0
        %310 = vmatprep.subr.mxu0 0.0
        %311 = vmatpush1.msra.mxu0 0.0
        %312 = vmatprep.subr.mxu0 0.0
        %313 = vmatpush1.msra.mxu0 0.0
        %314 = vmatprep.subr.mxu0 0.0
        %315 = vmatpush1.msra.mxu0 0.0
        %316 = vmatprep.subr.mxu0 0.0
        %317 = vmatpush1.msra.mxu0 0.0
        %318 = vmatprep.subr.mxu0 0.0
        %319 = vmatpush1.msra.mxu0 0.0
        %320 = vmatprep.subr.mxu0 0.0
        %321 = vmatpush1.msra.mxu0 0.0
        %322 = vmatprep.subr.mxu0 0.0
        %323 = vmatpush1.msra.mxu0 0.0
        %324 = vmatprep.subr.mxu0 0.0
        %325 = vmatpush1.msra.mxu0 0.0
        %326 = vmatprep.subr.mxu0 0.0
        %327 = vmatpush1.msra.mxu0 0.0
        %328 = vmatprep.subr.mxu0 0.0
        %329 = vmatpush1.msra.mxu0 0.0
        %330 = vmatprep.subr.mxu0 0.0
        %331 = vmatpush1.msra.mxu0 0.0
        %332 = vmatprep.subr.mxu0 0.0
        %333 = vmatpush1.msra.mxu0 0.0
        %334 = vmatprep.subr.mxu0 0.0
        %335 = vmatpush1.msra.mxu0 0.0
        %336 = vmatprep.subr.mxu0 0.0
        %337 = vmatpush1.msra.mxu0 0.0
        %338 = vmatprep.subr.mxu0 0.0
        %339 = vmatpush1.msra.mxu0 0.0
        %340 = vmatprep.subr.mxu0 0.0
        %341 = vmatpush1.msra.mxu0 0.0
        %342 = vmatprep.mubr.f32.mxu0 0.0
        %343 = vmatmul.mubr.f32.gmra.mrb[0].mxu0 %v183
        %v344 = vpop.f32.mrb[0].mxu0
        %v345 = vadd.f32 0.0, %v344
        %v346 = vpop.f32.mrb[0].mxu0
        %347 = vmatprep.mubr.f32.mxu0 0.0
        %348 = vmatmul.mubr.f32.gmra.mrb[0].mxu0 %v186
        %v349 = vpop.f32.mrb[0].mxu0
        %v350 = vadd.f32 0.0, %v349
        %v351 = vpop.f32.mrb[0].mxu0
        %352 = vmatprep.mubr.f32.mxu0 0.0
        %353 = vmatmul.mubr.f32.gmra.mrb[0].mxu0 %v189
        %v354 = vpop.f32.mrb[0].mxu0
        %v355 = vadd.f32 0.0, %v354
        %v356 = vpop.f32.mrb[0].mxu0
        %357 = vmatprep.mubr.f32.mxu0 0.0
        %358 = vmatmul.mubr.f32.gmra.mrb[0].mxu0 %v192
        %v359 = vpop.f32.mrb[0].mxu0
        %v360 = vadd.f32 0.0, %v359
        %v361 = vpop.f32.mrb[0].mxu0
        %362 = vmatprep.mubr.f32.mxu0 0.0
        %363 = vmatmul.mubr.f32.gmra.mrb[0].mxu0 %v195
        %v364 = vpop.f32.mrb[0].mxu0
        %v365 = vadd.f32 0.0, %v364
        %v366 = vpop.f32.mrb[0].mxu0
        %367 = vmatprep.mubr.f32.mxu0 0.0
        %368 = vmatmul.mubr.f32.gmra.mrb[0].mxu0 %v198
        %v369 = vpop.f32.mrb[0].mxu0
        %v370 = vadd.f32 0.0, %v369
        %v371 = vpop.f32.mrb[0].mxu0
        %372 = vmatprep.mubr.f32.mxu0 0.0
        %373 = vmatmul.mubr.f32.gmra.mrb[0].mxu0 %v201
        %v374 = vpop.f32.mrb[0].mxu0
        %v375 = vadd.f32 0.0, %v374
        %v376 = vpop.f32.mrb[0].mxu0
        %377 = vmatprep.mubr.f32.mxu0 0.0
        %378 = vmatmul.mubr.f32.gmra.mrb[0].mxu0 %v204
        %v379 = vpop.f32.mrb[0].mxu0
        %v380 = vadd.f32 0.0, %v379
        %v381 = vpop.f32.mrb[0].mxu0
        %382 = vmatprep.mubr.f32.mxu0 0.0
        %383 = vmatmul.mubr.f32.gmra.mrb[0].mxu0 %v207
        %v384 = vpop.f32.mrb[0].mxu0
        %v385 = vadd.f32 0.0, %v384
        %v386 = vpop.f32.mrb[0].mxu0
        %387 = vmatprep.mubr.f32.mxu0 0.0
        %388 = vmatmul.mubr.f32.gmra.mrb[0].mxu0 %v210
        %v389 = vpop.f32.mrb[0].mxu0
        %v390 = vadd.f32 0.0, %v389
        %v391 = vpop.f32.mrb[0].mxu0
        %392 = vmatprep.mubr.f32.mxu0 0.0
        %393 = vmatmul.mubr.f32.gmra.mrb[0].mxu0 %v213
        %v394 = vpop.f32.mrb[0].mxu0
        %v395 = vadd.f32 0.0, %v394
        %v396 = vpop.f32.mrb[0].mxu0
        %397 = vmatprep.mubr.f32.mxu0 0.0
        %398 = vmatmul.mubr.f32.gmra.mrb[0].mxu0 %v216
        %v399 = vpop.f32.mrb[0].mxu0
        %v400 = vadd.f32 0.0, %v399
        %v401 = vpop.f32.mrb[0].mxu0
        %402 = vmatprep.mubr.f32.mxu0 0.0
        %403 = vmatmul.mubr.f32.gmra.mrb[0].mxu0 %v219
        %v404 = vpop.f32.mrb[0].mxu0
        %v405 = vadd.f32 0.0, %v404
        %v406 = vpop.f32.mrb[0].mxu0
        %407 = vmatprep.mubr.f32.mxu0 0.0
        %408 = vmatmul.mubr.f32.gmra.mrb[0].mxu0 %v222
        %v409 = vpop.f32.mrb[0].mxu0
        %v410 = vadd.f32 0.0, %v409
        %v411 = vpop.f32.mrb[0].mxu0
        %412 = vmatprep.mubr.f32.mxu0 0.0
        %413 = vmatmul.mubr.f32.gmra.mrb[0].mxu0 %v225
        %v414 = vpop.f32.mrb[0].mxu0
        %v415 = vadd.f32 0.0, %v414
        %v416 = vpop.f32.mrb[0].mxu0
        %417 = vmatprep.mubr.f32.mxu0 0.0
        %418 = vmatmul.mubr.f32.gmra.mrb[0].mxu0 %v228
        %v419 = vpop.f32.mrb[0].mxu0
        %v420 = vadd.f32 0.0, %v419
        %v421 = vpop.f32.mrb[0].mxu0
        %422 = vmatprep.mubr.f32.mxu0 0.0
        %423 = vmatmul.mubr.f32.gmra.mrb[0].mxu0 %v231
        %v424 = vpop.f32.mrb[0].mxu0
        %v425 = vadd.f32 0.0, %v424
        %v426 = vpop.f32.mrb[0].mxu0
        %427 = vmatprep.mubr.f32.mxu0 0.0
        %428 = vmatmul.mubr.f32.gmra.mrb[0].mxu0 %v234
        %v429 = vpop.f32.mrb[0].mxu0
        %v430 = vadd.f32 0.0, %v429
        %v431 = vpop.f32.mrb[0].mxu0
        %432 = vmatprep.mubr.f32.mxu0 0.0
        %433 = vmatmul.mubr.f32.gmra.mrb[0].mxu0 %v237
        %v434 = vpop.f32.mrb[0].mxu0
        %v435 = vadd.f32 0.0, %v434
        %v436 = vpop.f32.mrb[0].mxu0
        %437 = vmatprep.mubr.f32.mxu0 0.0
        %438 = vmatmul.mubr.f32.gmra.mrb[0].mxu0 %v240
        %v439 = vpop.f32.mrb[0].mxu0
        %v440 = vadd.f32 0.0, %v439
        %v441 = vpop.f32.mrb[0].mxu0
        %442 = vmatprep.mubr.f32.mxu0 0.0
        %443 = vmatmul.mubr.f32.gmra.mrb[0].mxu0 %v243
        %v444 = vpop.f32.mrb[0].mxu0
        %v445 = vadd.f32 0.0, %v444
        %v446 = vpop.f32.mrb[0].mxu0
        %447 = vmatprep.mubr.f32.mxu0 0.0
        %448 = vmatmul.mubr.f32.gmra.mrb[0].mxu0 %v246
        %v449 = vpop.f32.mrb[0].mxu0
        %v450 = vadd.f32 0.0, %v449
        %v451 = vpop.f32.mrb[0].mxu0
        %452 = vmatprep.mubr.f32.mxu0 0.0
        %453 = vmatmul.mubr.f32.gmra.mrb[0].mxu0 %v249
        %v454 = vpop.f32.mrb[0].mxu0
        %v455 = vadd.f32 0.0, %v454
        %v456 = vpop.f32.mrb[0].mxu0
        %457 = vmatprep.mubr.f32.mxu0 0.0
        %458 = vmatmul.mubr.f32.gmra.mrb[0].mxu0 %v252
        %v459 = vpop.f32.mrb[0].mxu0
        %v460 = vadd.f32 0.0, %v459
        %v461 = vpop.f32.mrb[0].mxu0
        %462 = vmatprep.mubr.f32.mxu0 0.0
        %463 = vmatmul.mubr.f32.gmra.mrb[0].mxu0 %v255
        %v464 = vpop.f32.mrb[0].mxu0
        %v465 = vadd.f32 0.0, %v464
        %v466 = vpop.f32.mrb[0].mxu0
        %467 = vmatprep.mubr.f32.mxu0 0.0
        %468 = vmatmul.mubr.f32.gmra.mrb[0].mxu0 %v258
        %v469 = vpop.f32.mrb[0].mxu0
        %v470 = vadd.f32 0.0, %v469
        %v471 = vpop.f32.mrb[0].mxu0
        %472 = vmatprep.mubr.f32.mxu0 0.0
        %473 = vmatmul.mubr.f32.gmra.mrb[0].mxu0 %v261
        %v474 = vpop.f32.mrb[0].mxu0
        %v475 = vadd.f32 0.0, %v474
        %v476 = vpop.f32.mrb[0].mxu0
        %477 = vmatprep.mubr.f32.mxu0 0.0
        %478 = vmatmul.mubr.f32.gmra.mrb[0].mxu0 %v264
        %v479 = vpop.f32.mrb[0].mxu0
        %v480 = vadd.f32 0.0, %v479
        %v481 = vpop.f32.mrb[0].mxu0
        %482 = vmatprep.mubr.f32.mxu0 0.0
        %483 = vmatmul.mubr.f32.gmra.mrb[0].mxu0 %v267
        %v484 = vpop.f32.mrb[0].mxu0
        %v485 = vadd.f32 0.0, %v484
        %v486 = vpop.f32.mrb[0].mxu0
        %487 = vmatprep.mubr.f32.mxu0 0.0
        %488 = vmatmul.mubr.f32.gmra.mrb[0].mxu0 %v270
        %v489 = vpop.f32.mrb[0].mxu0
        %v490 = vadd.f32 0.0, %v489
        %v491 = vpop.f32.mrb[0].mxu0
        %492 = vmatprep.mubr.f32.mxu0 0.0
        %493 = vmatmul.mubr.f32.gmra.mrb[0].mxu0 %v273
        %v494 = vpop.f32.mrb[0].mxu0
        %v495 = vadd.f32 0.0, %v494
        %v496 = vpop.f32.mrb[0].mxu0
        %497 = vmatprep.mubr.f32.mxu0 0.0
        %498 = vmatmul.mubr.f32.gmra.mrb[0].mxu0 %v276
        %v499 = vpop.f32.mrb[0].mxu0
        %v500 = vadd.f32 0.0, %v499
        %v501 = vpop.f32.mrb[0].mxu0
        %502 = vdwg.mxu0
        %v503 = vpack.c.bf16 %v350, %v345
        %v504 = vpack.c.bf16 %v360, %v355
        %v505 = vpack.c.bf16 %v370, %v365
        %v506 = vpack.c.bf16 %v380, %v375
        %v507 = vpack.c.bf16 %v390, %v385
        %v508 = vpack.c.bf16 %v400, %v395
        %v509 = vpack.c.bf16 %v410, %v405
        %v510 = vpack.c.bf16 %v420, %v415
        %v511 = vpack.c.bf16 %v430, %v425
        %v512 = vpack.c.bf16 %v440, %v435
        %v513 = vpack.c.bf16 %v450, %v445
        %v514 = vpack.c.bf16 %v460, %v455
        %v515 = vpack.c.bf16 %v470, %v465
        %v516 = vpack.c.bf16 %v480, %v475
        %v517 = vpack.c.bf16 %v490, %v485
        %v518 = vpack.c.bf16 %v500, %v495
        %v535 = vunpack.c.l.b16 %v503
        %v536 = vunpack.c.h.b16 %v503
        %v537 = vunpack.c.l.b16 %v504
        %v538 = vunpack.c.h.b16 %v504
        %v539 = vunpack.c.l.b16 %v505
        %v540 = vunpack.c.h.b16 %v505
        %v541 = vunpack.c.l.b16 %v506
        %v542 = vunpack.c.h.b16 %v506
        %v543 = vunpack.c.l.b16 %v507
        %v544 = vunpack.c.h.b16 %v507
        %v545 = vunpack.c.l.b16 %v508
        %v546 = vunpack.c.h.b16 %v508
        %v547 = vunpack.c.l.b16 %v509
        %v548 = vunpack.c.h.b16 %v509
        %v549 = vunpack.c.l.b16 %v510
        %v550 = vunpack.c.h.b16 %v510
        %v551 = vunpack.c.l.b16 %v511
        %v552 = vunpack.c.h.b16 %v511
        %v553 = vunpack.c.l.b16 %v512
        %v554 = vunpack.c.h.b16 %v512
        %v555 = vunpack.c.l.b16 %v513
        %v556 = vunpack.c.h.b16 %v513
        %v557 = vunpack.c.l.b16 %v514
        %v558 = vunpack.c.h.b16 %v514
        %v559 = vunpack.c.l.b16 %v515
        %v560 = vunpack.c.h.b16 %v515
        %v561 = vunpack.c.l.b16 %v516
        %v562 = vunpack.c.h.b16 %v516
        %v563 = vunpack.c.l.b16 %v517
        %v564 = vunpack.c.h.b16 %v517
        %v565 = vunpack.c.l.b16 %v518
        %v566 = vunpack.c.h.b16 %v518
        %v567 = vpack.c.b16 %v535, %v535
        %v568 = vpack.c.b16 %v536, %v536
        %v569 = vpack.c.b16 %v537, %v537
        %v570 = vpack.c.b16 %v538, %v538
        %v571 = vpack.c.b16 %v539, %v539
        %v572 = vpack.c.b16 %v540, %v540
        %v573 = vpack.c.b16 %v541, %v541
        %v574 = vpack.c.b16 %v542, %v542
        %v575 = vpack.c.b16 %v543, %v543
        %v576 = vpack.c.b16 %v544, %v544
        %v577 = vpack.c.b16 %v545, %v545
        %v578 = vpack.c.b16 %v546, %v546
        %v579 = vpack.c.b16 %v547, %v547
        %v580 = vpack.c.b16 %v548, %v548
        %v581 = vpack.c.b16 %v549, %v549
        %v582 = vpack.c.b16 %v550, %v550
        %v583 = vpack.c.b16 %v551, %v551
        %v584 = vpack.c.b16 %v552, %v552
        %v585 = vpack.c.b16 %v553, %v553
        %v586 = vpack.c.b16 %v554, %v554
        %v587 = vpack.c.b16 %v555, %v555
        %v588 = vpack.c.b16 %v556, %v556
        %v589 = vpack.c.b16 %v557, %v557
        %v590 = vpack.c.b16 %v558, %v558
        %v591 = vpack.c.b16 %v559, %v559
        %v592 = vpack.c.b16 %v560, %v560
        %v593 = vpack.c.b16 %v561, %v561
        %v594 = vpack.c.b16 %v562, %v562
        %v595 = vpack.c.b16 %v563, %v563
        %v596 = vpack.c.b16 %v564, %v564
        %v597 = vpack.c.b16 %v565, %v565
        %v598 = vpack.c.b16 %v566, %v566
        %631 = vst [vmem:[%s137] sm:$0xf] %v567
        %632 = vst [vmem:[%s137 + $0x4] sm:$0xf] %v568
        %633 = vst [vmem:[%s137 + $0x8] sm:$0xf] %v569
        %634 = vst [vmem:[%s137 + $0xc] sm:$0xf] %v570
        %635 = vst [vmem:[%s137 + $0x10] sm:$0xf] %v571
        %636 = vst [vmem:[%s137 + $0x14] sm:$0xf] %v572
        %637 = vst [vmem:[%s137 + $0x18] sm:$0xf] %v573
        %638 = vst [vmem:[%s137 + $0x1c] sm:$0xf] %v574
        %639 = vst [vmem:[%s137 + $0x20] sm:$0xf] %v575
        %640 = vst [vmem:[%s137 + $0x24] sm:$0xf] %v576
        %641 = vst [vmem:[%s137 + $0x28] sm:$0xf] %v577
        %642 = vst [vmem:[%s137 + $0x2c] sm:$0xf] %v578
        %643 = vst [vmem:[%s137 + $0x30] sm:$0xf] %v579
        %644 = vst [vmem:[%s137 + $0x34] sm:$0xf] %v580
        %645 = vst [vmem:[%s137 + $0x38] sm:$0xf] %v581
        %646 = vst [vmem:[%s137 + $0x3c] sm:$0xf] %v582
        %647 = vst [vmem:[%s137 + $0x40] sm:$0xf] %v583
        %648 = vst [vmem:[%s137 + $0x44] sm:$0xf] %v584
        %649 = vst [vmem:[%s137 + $0x48] sm:$0xf] %v585
        %650 = vst [vmem:[%s137 + $0x4c] sm:$0xf] %v586
        %651 = vst [vmem:[%s137 + $0x50] sm:$0xf] %v587
        %652 = vst [vmem:[%s137 + $0x54] sm:$0xf] %v588
        %653 = vst [vmem:[%s137 + $0x58] sm:$0xf] %v589
        %654 = vst [vmem:[%s137 + $0x5c] sm:$0xf] %v590
        %655 = vst [vmem:[%s137 + $0x60] sm:$0xf] %v591
        %656 = vst [vmem:[%s137 + $0x64] sm:$0xf] %v592
        %657 = vst [vmem:[%s137 + $0x68] sm:$0xf] %v593
        %658 = vst [vmem:[%s137 + $0x6c] sm:$0xf] %v594
        %659 = vst [vmem:[%s137 + $0x70] sm:$0xf] %v595
        %660 = vst [vmem:[%s137 + $0x74] sm:$0xf] %v596
        %661 = vst [vmem:[%s137 + $0x78] sm:$0xf] %v597
        %662 = vst [vmem:[%s137 + $0x7c] sm:$0xf] %v598
        %s663 = sand.u32 %s71, 1
        %s664 = scalar_lea.sflag [#allocation3], %s663
        %s665 = sand.u32 %s71, 1
        %s666 = smul.addr %s665, 128
        %s667 = scalar_lea.vmem [#allocation2], %s666
        // Predicated region
        $region29: #{tpu_custom_call.1} parent=27 // pred_check
          %p668 = pneg %p81
        $region30: #{tpu_custom_call.1} parent=27 // pred_check_branch
          %670 = sbr.rel (%p668) target = $region32
        $region31: #{tpu_custom_call.1} parent=27 // pred_region
          %s671 = smul.u32 32, %s16
          %s673 = ssub.s32 2048, 2048
          %674 = vsyncadd %s664, %s673
          %s675 = smul.addr %s671, 64
          %s676 = scalar_lea.hbm %s2, %s675
          %s677 = sshll.u32 %s667, 4
          %s678 = int_to_ptr.vmem [resolvable:$true] %s677
          %683 = dma.vmem_to_hbm [thread:$0]  %s678, 2048, %s676, %s664, 64, 64, 4
        $region32: #{tpu_custom_call.1} parent=27 // pred_fallthru
          _
      $region28: #{tpu_custom_call.1} parent=5 // pred_fallthru
        _
      %p684 = scmp.le.s32.totalorder 2, %s11
      // Predicated region
      $region33: #{tpu_custom_call.1} parent=5 // pred_check
        %p685 = pneg %p684
      $region34: #{tpu_custom_call.1} parent=5 // pred_check_branch
        %687 = sbr.rel (%p685) target = $region36
      $region35: #{tpu_custom_call.1} parent=5 // pred_region
        %s688 = ssub.s32 %s11, 2
        // Predicated region
        $region37: #{tpu_custom_call.1} parent=35 // pred_check
          %p689 = pneg %p87
        $region38: #{tpu_custom_call.1} parent=35 // pred_check_branch
          %691 = sbr.rel (%p689) target = $region40
        $region39: #{tpu_custom_call.1} parent=35 // pred_region
          %s692 = sand.u32 %s72, 1
          %s693 = scalar_lea.sflag [#allocation3], %s692
          %s694 = sand.u32 %s72, 1
          %s695 = smul.addr %s694, 128
          %s696 = scalar_lea.vmem [#allocation2], %s695
          %697 = dma.done %s693, 2048
        $region40: #{tpu_custom_call.1} parent=35 // pred_fallthru
          _
      $region36: #{tpu_custom_call.1} parent=5 // pred_fallthru
        _
    $region6: #{tpu_custom_call.1} parent=1 // loop_footer
      %s15 = sadd.s32 1, %s11
    $region7: #{tpu_custom_call.1} parent=1 // loop_footer_branch
      %10 = sbr.rel target = $region3
    $region8: #{tpu_custom_call.1} parent=1 // loop_exit
      _
    %698 = vsyncpa [#allocation3], 1
    %s699 = scalar_lea.sflag [#allocation3], 1
    %700 = vsyncpa %s699, 1

</llo_original>
